<compile_context>
chip_gen: v6e
topology: v6e:2x2x1
jax: 0.10.0
libtpu: 0.0.40
codegen_flags: <defaults>
</compile_context>

<pallas_src>
import jax
import jax.numpy as jnp
from jax.experimental import pallas as pl
from jax.experimental.pallas import tpu as pltpu

# Safe on every generation: v5e/v6e have 128 MiB physical VMEM, v7x has 64 MiB
# per TensorCore (review: do not raise beyond ~48 MiB there).
_VMEM_LIMIT_BYTES = 48 << 20
# Per-grid-step working-set target (double-buffered I/O blocks + f32 temps).
# <= ~24 MiB keeps the DMA pipeline healthy on v7x and is far under v5e/v6e.
_PER_STEP_BUDGET_BYTES = 24 << 20


def _blur_kernel(x_ref, o_ref):
    """Depthwise 3x3 binomial blur on one (H, W, C_tile) channels-last slab.

    Channels ride the 128-wide lane axis, W the sublane axis, H the leading
    axis.  The zero halo comes from concatenating thin zero slabs, so there is
    no padded copy of the input and no scratch buffers at all.
    """
    H, W, Ct = o_ref.shape
    x = x_ref[...].astype(jnp.float32)

    # Horizontal (W axis, sublanes) 1-2-1 with zero boundary.
    zc = jnp.zeros((H, 1, Ct), dtype=jnp.float32)
    left = jnp.concatenate([zc, x[:, :W - 1, :]], axis=1)
    right = jnp.concatenate([x[:, 1:, :], zc], axis=1)
    h = left + right + (x + x)

    # Vertical (H axis, leading dim) 1-2-1 with zero boundary, then one 1/16.
    zr = jnp.zeros((1, W, Ct), dtype=jnp.float32)
    up = jnp.concatenate([zr, h[:H - 1, :, :]], axis=0)
    down = jnp.concatenate([h[1:, :, :], zr], axis=0)
    out = (up + down + (h + h)) * jnp.float32(1.0 / 16.0)

    o_ref[...] = out.astype(o_ref.dtype)


def _round_up(v, m):
    return -(-v // m) * m


def _step_bytes(H, W, ct, itemsize):
    """Per-grid-step VMEM bytes, including (8,128) layout rounding."""
    blk = H * _round_up(W, 8) * _round_up(ct, 128)   # elements per block
    io = 2 * 2 * blk * itemsize                      # double-buffered in + out
    temps = 5 * blk * 4                              # f32 x / h / out + shift temps
    return io + temps


def _choose_c_tile(N, C, H, W, itemsize, budget_bytes=_PER_STEP_BUDGET_BYTES):
    """Channel tile: full C, or a multiple of 128 that divides C (the block's
    last dim must be a multiple of 128 or the full extent).  Picks the largest
    tile fitting the per-step VMEM budget, then shrinks if needed so the grid
    has >= 2 points (lets the 'parallel' axes shard across v7x's two cores)."""
    cands = [C] + [c for c in range((C // 128) * 128, 0, -128) if C % c == 0]
    cands = list(dict.fromkeys(cands))               # dedupe, descending order
    c_tile = None
    for c in cands:
        if _step_bytes(H, W, c, itemsize) <= budget_bytes:
            c_tile = c
            break
    if c_tile is None:
        c_tile = cands[-1]                           # smallest legal tile
    if N * (C // c_tile) < 2:
        for c in cands:
            if c < c_tile and _step_bytes(H, W, c, itemsize) <= budget_bytes:
                c_tile = c
                break
    return c_tile


@jax.jit
def blur(x):
    """Depthwise 3x3 binomial blur, padding=1.  x: (N, C, H, W)."""
    N, C, H, W = x.shape
    # Lane-dense relayout: channels last, so every block/VMEM tile has the
    # channel count on the 128-wide lane axis and W on sublanes.  (For the
    # rare tiny-C / W>=128 case NCHW would be preferable; DFDNet feature maps
    # have C in 64..512 and W in 8..64, so channels-last is the right layout.)
    xt = jnp.transpose(x, (0, 2, 3, 1))              # (N, H, W, C)
    c_tile = _choose_c_tile(N, C, H, W, x.dtype.itemsize)
    out_t = pl.pallas_call(
        _blur_kernel,
        out_shape=jax.ShapeDtypeStruct((N, H, W, C), x.dtype),
        grid=(N, C // c_tile),
        in_specs=[pl.BlockSpec((None, H, W, c_tile), lambda n, c: (n, 0, 0, c))],
        out_specs=pl.BlockSpec((None, H, W, c_tile), lambda n, c: (n, 0, 0, c)),
        compiler_params=pltpu.CompilerParams(
            dimension_semantics=("parallel", "parallel"),
            vmem_limit_bytes=_VMEM_LIMIT_BYTES),
    )(xt)
    return jnp.transpose(out_t, (0, 3, 1, 2))        # back to NCHW


class Blur:
    """JAX/Pallas port of basicsr.archs.dfdnet_util.Blur (forward only)."""

    def __init__(self, channel):
        k = jnp.array([[1.0, 2.0, 1.0],
                       [2.0, 4.0, 2.0],
                       [1.0, 2.0, 1.0]], dtype=jnp.float32)
        k = k / k.sum()
        # Kept for parity with the PyTorch module (per-channel depthwise
        # weights); the forward kernel hardcodes these fixed binomial taps.
        self.kernel = jnp.broadcast_to(k[None, None], (channel, 1, 3, 3))
        self.kernel_flip = jnp.broadcast_to(k[::-1, ::-1][None, None],
                                            (channel, 1, 3, 3))
        self.channel = channel
        # TODO(synk): custom autograd backward (BlurFunctionBackward) is not
        # implemented; this port covers the forward pass only.

    def __call__(self, x):
        return blur(x)


def _ref_blur(x):
    """Pure-JAX reference: depthwise conv with the binomial kernel, padding=1."""
    N, C, H, W = x.shape
    k = jnp.array([[1.0, 2.0, 1.0],
                   [2.0, 4.0, 2.0],
                   [1.0, 2.0, 1.0]], dtype=x.dtype) / 16.0
    w = jnp.broadcast_to(k[None, None, :, :], (C, 1, 3, 3))
    return jax.lax.conv_general_dilated(
        x, w, window_strides=(1, 1), padding=((1, 1), (1, 1)),
        dimension_numbers=("NCHW", "OIHW", "NCHW"),
        feature_group_count=C)


if __name__ == "__main__":
    key = jax.random.PRNGKey(0)

    # Small NCHW feature map consistent with the module's usage.
    N, C, H, W = 2, 4, 16, 16
    x = jax.random.normal(key, (N, C, H, W), dtype=jnp.float32)
    mod = Blur(C)
    y = mod(x)
    jax.block_until_ready(y)
    assert y.shape == (N, C, H, W)
    assert jnp.allclose(y, _ref_blur(x), atol=1e-5, rtol=1e-5), "mismatch (case 1)"

    # Second case exercising the multiple-of-128 channel tiling and the
    # ">= 2 grid points" split (N=1, C=256 -> c_tile=128, grid=(1, 2)).
    x2 = jax.random.normal(jax.random.PRNGKey(0), (1, 256, 8, 8),
                           dtype=jnp.float32)
    y2 = blur(x2)
    jax.block_until_ready(y2)
    assert jnp.allclose(y2, _ref_blur(x2), atol=1e-5, rtol=1e-5), "mismatch (case 2)"

    print("KERNEL_OK")
</pallas_src>

<mosaic_0001>
module attributes {stable_mosaic.version = 11 : i64} {
  func.func @_blur_kernel(%arg0: i32, %arg1: i32, %arg2: memref<1x16x16x4xf32, #tpu.memory_space<vmem>>, %arg3: memref<1x16x16x4xf32, #tpu.memory_space<vmem>>) attributes {dimension_semantics = [#tpu.dimension_semantics<parallel>, #tpu.dimension_semantics<parallel>], iteration_bounds = array<i64: 2, 1>, scalar_prefetch = 0 : i64, scratch_operands = 0 : i64, tpu.core_type = #tpu.core_type<tc>, window_params = [{transform_indices = @transform_0, window_bounds = array<i64: 1, 16, 16, 4>}, {transform_indices = @transform_1, window_bounds = array<i64: 1, 16, 16, 4>}]} {
    %c0 = arith.constant 0 : index
    %c0_0 = arith.constant 0 : index
    %c0_1 = arith.constant 0 : index
    %c0_2 = arith.constant 0 : index
    %0 = vector.load %arg2[%c0, %c0_0, %c0_1, %c0_2] : memref<1x16x16x4xf32, #tpu.memory_space<vmem>>, vector<1x16x16x4xf32>
    %1 = vector.shape_cast %0 : vector<1x16x16x4xf32> to vector<16x16x4xf32>
    %cst = arith.constant 0.000000e+00 : f32
    %2 = vector.broadcast %cst : f32 to vector<16x1x4xf32>
    %3 = vector.extract_strided_slice %1 {offsets = [0, 0, 0], sizes = [16, 15, 4], strides = [1, 1, 1]} : vector<16x16x4xf32> to vector<16x15x4xf32>
    %4 = tpu.concatenate %2, %3 in 1 : vector<16x1x4xf32>, vector<16x15x4xf32> -> vector<16x16x4xf32>
    %5 = vector.extract_strided_slice %1 {offsets = [0, 1, 0], sizes = [16, 15, 4], strides = [1, 1, 1]} : vector<16x16x4xf32> to vector<16x15x4xf32>
    %6 = tpu.concatenate %5, %2 in 1 : vector<16x15x4xf32>, vector<16x1x4xf32> -> vector<16x16x4xf32>
    %7 = arith.addf %4, %6 : vector<16x16x4xf32>
    %8 = arith.addf %1, %1 : vector<16x16x4xf32>
    %9 = arith.addf %7, %8 : vector<16x16x4xf32>
    %cst_3 = arith.constant 0.000000e+00 : f32
    %10 = vector.broadcast %cst_3 : f32 to vector<1x16x4xf32>
    %11 = vector.extract_strided_slice %9 {offsets = [0, 0, 0], sizes = [15, 16, 4], strides = [1, 1, 1]} : vector<16x16x4xf32> to vector<15x16x4xf32>
    %12 = tpu.concatenate %10, %11 in 0 : vector<1x16x4xf32>, vector<15x16x4xf32> -> vector<16x16x4xf32>
    %13 = vector.extract_strided_slice %9 {offsets = [1, 0, 0], sizes = [15, 16, 4], strides = [1, 1, 1]} : vector<16x16x4xf32> to vector<15x16x4xf32>
    %14 = tpu.concatenate %13, %10 in 0 : vector<15x16x4xf32>, vector<1x16x4xf32> -> vector<16x16x4xf32>
    %15 = arith.addf %12, %14 : vector<16x16x4xf32>
    %16 = arith.addf %9, %9 : vector<16x16x4xf32>
    %17 = arith.addf %15, %16 : vector<16x16x4xf32>
    %cst_4 = arith.constant 6.250000e-02 : f32
    %18 = vector.broadcast %cst_4 : f32 to vector<16x16x4xf32>
    %19 = arith.mulf %17, %18 : vector<16x16x4xf32>
    %c0_5 = arith.constant 0 : index
    %c0_6 = arith.constant 0 : index
    %c0_7 = arith.constant 0 : index
    %c0_8 = arith.constant 0 : index
    %20 = vector.load %arg3[%c0_5, %c0_6, %c0_7, %c0_8] : memref<1x16x16x4xf32, #tpu.memory_space<vmem>>, vector<1x16x16x4xf32>
    %21 = vector.shape_cast %20 : vector<1x16x16x4xf32> to vector<16x16x4xf32>
    %22 = vector.shape_cast %19 : vector<16x16x4xf32> to vector<1x16x16x4xf32>
    tpu.vector_store %arg3[%c0_5, %c0_6, %c0_7, %c0_8], %22 {strides = array<i32>} : memref<1x16x16x4xf32, #tpu.memory_space<vmem>>, vector<1x16x16x4xf32>,
    return
  }
  func.func @transform_0(%arg0: i32, %arg1: i32) -> (i32, i32, i32, i32) {
    %c0_i32 = arith.constant 0 : i32
    %c0_i32_0 = arith.constant 0 : i32
    %c0_i32_1 = arith.constant 0 : i32
    return %arg0, %c0_i32, %c0_i32_0, %arg1 : i32, i32, i32, i32
  }
  func.func @transform_1(%arg0: i32, %arg1: i32) -> (i32, i32, i32, i32) {
    %c0_i32 = arith.constant 0 : i32
    %c0_i32_0 = arith.constant 0 : i32
    %c0_i32_1 = arith.constant 0 : i32
    return %arg0, %c0_i32, %c0_i32_0, %arg1 : i32, i32, i32, i32
  }
}

</mosaic_0001>

<llo_original>
// kernel: blur.1
$region0: #{blur.1}
  #allocation0 [shape = 'u32[]', space=smem, size = 0x4, offset = 0x4, fixed_abs, tag = 'smem constant byte address 0x4 - core index']
  #allocation1 [shape = 'u32[144,128]{1,0:T(1,128)}', space=vmem, size = 0x12000, scoped, tag = 'internal scratch']
  %s0 = inlined_call_operand.vmem [shape: f32[2,16,16,4], index: 0, kind: input, shape index: {}]
  %s1 = inlined_call_operand.vmem [shape: f32[2,16,16,4], index: 1, kind: output, shape index: {}]
  %s2 = sld [smem:[#allocation0]]
  $region37: #{blur.1} parent=0
    _
  %s4 = ssub.s32 1, %s2
  %s5 = scalar_select 0, %s4, %s2
  loop: start=0, step=1, limit=4
  $region2: #{blur.1} parent=0 // loop_pre_header
    _
  $region3: #{blur.1} parent=0 // loop_header
    %s7 = sphi 0, %s11
    %p8 = scmp.ge.s32.totalorder %s7, 4
    %s14 = sphi 0, %s26
    %s15 = sphi 0, %s22
    %s16 = sphi 0, %s14
    %s17 = sphi 0, %s15
    %s18 = sphi 0, %s16
    %s19 = sphi 0, %s17
    %s31 = sphi 0, %s33
    %s34 = sphi 0, %s31
    %s35 = sphi 0, %s34
    %s51 = sphi 0, %s35
    %s59 = sphi 0, %s61
    %s62 = sphi 0, %s59
    %s63 = sphi 0, %s62
    %s79 = sphi 0, %s63
  $region4: #{blur.1} parent=0 // loop_header_branch
    %10 = sbr.rel (%p8) target = $region8
  $region5: #{blur.1} parent=0 // loop_body
    %s12 = ssub.s32 %s7, 1
    %s13 = ssub.s32 %s7, 2
    %s20 = sadd.s32 1, %s15
    %p21 = scmp.ge.s32.totalorder %s20, 1
    %s22 = scalar_select %p21, 0, %s20
    %s23 = sadd.s32 1, %s14
    %s24 = scalar_select %p21, %s23, %s14
    %p25 = scmp.ge.s32.totalorder %s24, 2
    %s26 = scalar_select %p25, 0, %s24
    %s27 = ssub.s32 %s14, %s26
    %s28 = ssub.s32 %s15, %s22
    %s29 = sor.u32 %s27, %s28
    %p30 = scmp.eq.s32.totalorder %s29, 0
    %s32 = sadd.s32 %s31, 1
    %s33 = scalar_select %p30, %s31, %s32
    %p36 = pneg %p30
    %p37 = scmp.eq.s32.totalorder %s7, 1
    %p38 = por %p36, %p37
    %p39 = scmp.ne.s32.totalorder %s31, %s34
    %p40 = scmp.eq.s32.totalorder %s7, 0
    %p41 = por %p39, %p40
    %p42 = scmp.ne.s32.totalorder %s31, %s34
    %p43 = scmp.eq.s32.totalorder %s12, 1
    %p44 = por %p42, %p43
    %p45 = scmp.ne.s32.totalorder %s34, %s35
    %p46 = scmp.eq.s32.totalorder %s12, 0
    %p47 = por %p45, %p46
    %p48 = scmp.ne.s32.totalorder %s34, %s35
    %p49 = scmp.eq.s32.totalorder %s13, 1
    %p50 = por %p48, %p49
    %p52 = scmp.ne.s32.totalorder %s35, %s51
    %p53 = scmp.eq.s32.totalorder %s13, 0
    %p54 = por %p52, %p53
    %s55 = ssub.s32 %s14, %s26
    %s56 = ssub.s32 %s15, %s22
    %s57 = sor.u32 %s55, %s56
    %p58 = scmp.eq.s32.totalorder %s57, 0
    %s60 = sadd.s32 %s59, 1
    %s61 = scalar_select %p58, %s59, %s60
    %p64 = pneg %p58
    %p65 = scmp.eq.s32.totalorder %s7, 1
    %p66 = por %p64, %p65
    %p67 = scmp.ne.s32.totalorder %s59, %s62
    %p68 = scmp.eq.s32.totalorder %s7, 0
    %p69 = por %p67, %p68
    %p70 = scmp.ne.s32.totalorder %s59, %s62
    %p71 = scmp.eq.s32.totalorder %s12, 1
    %p72 = por %p70, %p71
    %p73 = scmp.ne.s32.totalorder %s62, %s63
    %p74 = scmp.eq.s32.totalorder %s12, 0
    %p75 = por %p73, %p74
    %p76 = scmp.ne.s32.totalorder %s62, %s63
    %p77 = scmp.eq.s32.totalorder %s13, 1
    %p78 = por %p76, %p77
    %p80 = scmp.ne.s32.totalorder %s63, %s79
    %p81 = scmp.eq.s32.totalorder %s13, 0
    %p82 = por %p80, %p81
    %p83 = scmp.le.s32.totalorder 1, %s7
    %p84 = scmp.lt.s32.totalorder %s7, 3
    %p85 = pnand %p83, %p84
    %p86 = pneg %p85
    // Predicated region
    $region9: #{blur.1} parent=5 // pred_check
      _
    $region10: #{blur.1} parent=5 // pred_check_branch
      %88 = sbr.rel (%p85) target = $region12
    $region11: #{blur.1} parent=5 // pred_region
      %s89 = ssub.s32 %s7, 1
    $region12: #{blur.1} parent=5 // pred_fallthru
      _
    %p90 = scmp.lt.s32.totalorder %s7, 2
    // Predicated region
    $region13: #{blur.1} parent=5 // pred_check
      %p91 = pneg %p90
    $region14: #{blur.1} parent=5 // pred_check_branch
      %93 = sbr.rel (%p91) target = $region16
    $region15: #{blur.1} parent=5 // pred_region
      // Predicated region
      $region17: #{blur.1} parent=15 // pred_check
        %p94 = pneg %p41
      $region18: #{blur.1} parent=15 // pred_check_branch
        %96 = sbr.rel (%p94) target = $region20
      $region19: #{blur.1} parent=15 // pred_region
        %p97 = scmp.lt.s32.totalorder %s14, 1
        %s98 = scalar_select %p97, %s14, 1
        %p99 = scmp.lt.s32.totalorder %s15, 0
        %s100 = scalar_select %p99, %s15, 0
        %s101 = smul.addr %s98, 32
        %s102 = sadd.s32 %s100, %s101
        %s103 = smul.addr %s102, 8
        %s104 = scalar_lea.vmem %s0, %s103
      $region20: #{blur.1} parent=15 // pred_fallthru
        _
    $region16: #{blur.1} parent=5 // pred_fallthru
      _
    %p105 = scmp.le.s32.totalorder 1, %s7
    %p106 = scmp.lt.s32.totalorder %s7, 3
    %p107 = pnand %p105, %p106
    %p108 = pneg %p107
    // Predicated region
    $region21: #{blur.1} parent=5 // pred_check
      _
    $region22: #{blur.1} parent=5 // pred_check_branch
      %110 = sbr.rel (%p107) target = $region24
    $region23: #{blur.1} parent=5 // pred_region
      %s111 = ssub.s32 %s7, 1
      %p112 = scmp.lt.s32.totalorder %s16, 1
      %s113 = scalar_select %p112, %s16, 1
      %p114 = scmp.lt.s32.totalorder %s17, 0
      %s115 = scalar_select %p114, %s17, 0
      %s116 = smul.addr %s113, 32
      %s117 = sadd.s32 %s115, %s116
      %s118 = smul.addr %s117, 8
      %s119 = scalar_lea.vmem %s0, %s118
      %p120 = pneg %p47
      %p121 = pneg %p44
      %p122 = pneg %p75
      %p123 = pneg %p72
      %p124 = scmp.lt.s32.totalorder %s16, 1
      %s125 = scalar_select %p124, %s16, 1
      %p126 = scmp.lt.s32.totalorder %s17, 0
      %s127 = scalar_select %p126, %s17, 0
      %s128 = smul.addr %s125, 32
      %s129 = sadd.s32 %s127, %s128
      %s130 = smul.addr %s129, 8
      %s131 = scalar_lea.vmem %s1, %s130
      %p132 = scmp.lt.s32.totalorder %s16, 1
      %s133 = scalar_select %p132, %s16, 1
      %p134 = scmp.lt.s32.totalorder %s17, 0
      %s135 = scalar_select %p134, %s17, 0
      %s136 = smul.addr %s133, 32
      %s137 = sadd.s32 %s135, %s136
      %s138 = smul.addr %s137, 8
      %s139 = scalar_lea.vmem %s0, %s138
      %p140 = scmp.lt.s32.totalorder %s16, 1
      %s141 = scalar_select %p140, %s16, 1
      %p142 = scmp.lt.s32.totalorder %s17, 0
      %s143 = scalar_select %p142, %s17, 0
      %s144 = smul.addr %s141, 32
      %s145 = sadd.s32 %s143, %s144
      %s146 = smul.addr %s145, 8
      %s147 = scalar_lea.vmem %s1, %s146
      %v148 = vld [vmem:[%s139] sm:$0xff]
      %v149 = vld [vmem:[%s139 + $0x8] sm:$0xff]
      %v150 = vld [vmem:[%s139 + $0x10] sm:$0xff]
      %v151 = vld [vmem:[%s139 + $0x18] sm:$0xff]
      %v152 = vld [vmem:[%s139 + $0x20] sm:$0xff]
      %v153 = vld [vmem:[%s139 + $0x28] sm:$0xff]
      %v154 = vld [vmem:[%s139 + $0x30] sm:$0xff]
      %v155 = vld [vmem:[%s139 + $0x38] sm:$0xff]
      %v156 = vld [vmem:[%s139 + $0x40] sm:$0xff]
      %v157 = vld [vmem:[%s139 + $0x48] sm:$0xff]
      %v158 = vld [vmem:[%s139 + $0x50] sm:$0xff]
      %v159 = vld [vmem:[%s139 + $0x58] sm:$0xff]
      %v160 = vld [vmem:[%s139 + $0x60] sm:$0xff]
      %v161 = vld [vmem:[%s139 + $0x68] sm:$0xff]
      %v162 = vld [vmem:[%s139 + $0x70] sm:$0xff]
      %v163 = vld [vmem:[%s139 + $0x78] sm:$0xff]
      %v164 = vld [vmem:[%s139 + $0x80] sm:$0xff]
      %v165 = vld [vmem:[%s139 + $0x88] sm:$0xff]
      %v166 = vld [vmem:[%s139 + $0x90] sm:$0xff]
      %v167 = vld [vmem:[%s139 + $0x98] sm:$0xff]
      %v168 = vld [vmem:[%s139 + $0xa0] sm:$0xff]
      %v169 = vld [vmem:[%s139 + $0xa8] sm:$0xff]
      %v170 = vld [vmem:[%s139 + $0xb0] sm:$0xff]
      %v171 = vld [vmem:[%s139 + $0xb8] sm:$0xff]
      %v172 = vld [vmem:[%s139 + $0xc0] sm:$0xff]
      %v173 = vld [vmem:[%s139 + $0xc8] sm:$0xff]
      %v174 = vld [vmem:[%s139 + $0xd0] sm:$0xff]
      %v175 = vld [vmem:[%s139 + $0xd8] sm:$0xff]
      %v176 = vld [vmem:[%s139 + $0xe0] sm:$0xff]
      %v177 = vld [vmem:[%s139 + $0xe8] sm:$0xff]
      %v178 = vld [vmem:[%s139 + $0xf0] sm:$0xff]
      %v179 = vld [vmem:[%s139 + $0xf8] sm:$0xff]
      %vm212 = vcmask 1040384
      %v213 = vrot.slane %v148, 7
      %v214 = vrot.slane %v149, 7
      %v215 = vsel %vm212, %v213, %v214
      %v216 = vrot.slane %v150, 7
      %v217 = vrot.slane %v151, 7
      %v218 = vsel %vm212, %v216, %v217
      %v219 = vrot.slane %v152, 7
      %v220 = vrot.slane %v153, 7
      %v221 = vsel %vm212, %v219, %v220
      %v222 = vrot.slane %v154, 7
      %v223 = vrot.slane %v155, 7
      %v224 = vsel %vm212, %v222, %v223
      %v225 = vrot.slane %v156, 7
      %v226 = vrot.slane %v157, 7
      %v227 = vsel %vm212, %v225, %v226
      %v228 = vrot.slane %v158, 7
      %v229 = vrot.slane %v159, 7
      %v230 = vsel %vm212, %v228, %v229
      %v231 = vrot.slane %v160, 7
      %v232 = vrot.slane %v161, 7
      %v233 = vsel %vm212, %v231, %v232
      %v234 = vrot.slane %v162, 7
      %v235 = vrot.slane %v163, 7
      %v236 = vsel %vm212, %v234, %v235
      %v237 = vrot.slane %v164, 7
      %v238 = vrot.slane %v165, 7
      %v239 = vsel %vm212, %v237, %v238
      %v240 = vrot.slane %v166, 7
      %v241 = vrot.slane %v167, 7
      %v242 = vsel %vm212, %v240, %v241
      %v243 = vrot.slane %v168, 7
      %v244 = vrot.slane %v169, 7
      %v245 = vsel %vm212, %v243, %v244
      %v246 = vrot.slane %v170, 7
      %v247 = vrot.slane %v171, 7
      %v248 = vsel %vm212, %v246, %v247
      %v249 = vrot.slane %v172, 7
      %v250 = vrot.slane %v173, 7
      %v251 = vsel %vm212, %v249, %v250
      %v252 = vrot.slane %v174, 7
      %v253 = vrot.slane %v175, 7
      %v254 = vsel %vm212, %v252, %v253
      %v255 = vrot.slane %v176, 7
      %v256 = vrot.slane %v177, 7
      %v257 = vsel %vm212, %v255, %v256
      %v258 = vrot.slane %v178, 7
      %v259 = vrot.slane %v179, 7
      %v260 = vsel %vm212, %v258, %v259
      %v293 = vsel %vm212, 0.0, %v213
      %v294 = vsel %vm212, 0.0, %v216
      %v295 = vsel %vm212, 0.0, %v219
      %v296 = vsel %vm212, 0.0, %v222
      %v297 = vsel %vm212, 0.0, %v225
      %v298 = vsel %vm212, 0.0, %v228
      %v299 = vsel %vm212, 0.0, %v231
      %v300 = vsel %vm212, 0.0, %v234
      %v301 = vsel %vm212, 0.0, %v237
      %v302 = vsel %vm212, 0.0, %v240
      %v303 = vsel %vm212, 0.0, %v243
      %v304 = vsel %vm212, 0.0, %v246
      %v305 = vsel %vm212, 0.0, %v249
      %v306 = vsel %vm212, 0.0, %v252
      %v307 = vsel %vm212, 0.0, %v255
      %v308 = vsel %vm212, 0.0, %v258
      %vm309 = vcmask 1046528
      %v310 = vrot.slane %v148, 1
      %v311 = vrot.slane %v149, 1
      %v312 = vsel %vm309, %v310, %v311
      %v313 = vrot.slane %v150, 1
      %v314 = vrot.slane %v151, 1
      %v315 = vsel %vm309, %v313, %v314
      %v316 = vrot.slane %v152, 1
      %v317 = vrot.slane %v153, 1
      %v318 = vsel %vm309, %v316, %v317
      %v319 = vrot.slane %v154, 1
      %v320 = vrot.slane %v155, 1
      %v321 = vsel %vm309, %v319, %v320
      %v322 = vrot.slane %v156, 1
      %v323 = vrot.slane %v157, 1
      %v324 = vsel %vm309, %v322, %v323
      %v325 = vrot.slane %v158, 1
      %v326 = vrot.slane %v159, 1
      %v327 = vsel %vm309, %v325, %v326
      %v328 = vrot.slane %v160, 1
      %v329 = vrot.slane %v161, 1
      %v330 = vsel %vm309, %v328, %v329
      %v331 = vrot.slane %v162, 1
      %v332 = vrot.slane %v163, 1
      %v333 = vsel %vm309, %v331, %v332
      %v334 = vrot.slane %v164, 1
      %v335 = vrot.slane %v165, 1
      %v336 = vsel %vm309, %v334, %v335
      %v337 = vrot.slane %v166, 1
      %v338 = vrot.slane %v167, 1
      %v339 = vsel %vm309, %v337, %v338
      %v340 = vrot.slane %v168, 1
      %v341 = vrot.slane %v169, 1
      %v342 = vsel %vm309, %v340, %v341
      %v343 = vrot.slane %v170, 1
      %v344 = vrot.slane %v171, 1
      %v345 = vsel %vm309, %v343, %v344
      %v346 = vrot.slane %v172, 1
      %v347 = vrot.slane %v173, 1
      %v348 = vsel %vm309, %v346, %v347
      %v349 = vrot.slane %v174, 1
      %v350 = vrot.slane %v175, 1
      %v351 = vsel %vm309, %v349, %v350
      %v352 = vrot.slane %v176, 1
      %v353 = vrot.slane %v177, 1
      %v354 = vsel %vm309, %v352, %v353
      %v355 = vrot.slane %v178, 1
      %v356 = vrot.slane %v179, 1
      %v357 = vsel %vm309, %v355, %v356
      %v390 = vsel %vm309, %v311, 0.0
      %v391 = vsel %vm309, %v314, 0.0
      %v392 = vsel %vm309, %v317, 0.0
      %v393 = vsel %vm309, %v320, 0.0
      %v394 = vsel %vm309, %v323, 0.0
      %v395 = vsel %vm309, %v326, 0.0
      %v396 = vsel %vm309, %v329, 0.0
      %v397 = vsel %vm309, %v332, 0.0
      %v398 = vsel %vm309, %v335, 0.0
      %v399 = vsel %vm309, %v338, 0.0
      %v400 = vsel %vm309, %v341, 0.0
      %v401 = vsel %vm309, %v344, 0.0
      %v402 = vsel %vm309, %v347, 0.0
      %v403 = vsel %vm309, %v350, 0.0
      %v404 = vsel %vm309, %v353, 0.0
      %v405 = vsel %vm309, %v356, 0.0
      %v406 = vadd.f32 %v293, %v312
      %v407 = vadd.f32 %v215, %v390
      %v408 = vadd.f32 %v294, %v315
      %v409 = vadd.f32 %v218, %v391
      %v410 = vadd.f32 %v295, %v318
      %v411 = vadd.f32 %v221, %v392
      %v412 = vadd.f32 %v296, %v321
      %v413 = vadd.f32 %v224, %v393
      %v414 = vadd.f32 %v297, %v324
      %v415 = vadd.f32 %v227, %v394
      %v416 = vadd.f32 %v298, %v327
      %v417 = vadd.f32 %v230, %v395
      %v418 = vadd.f32 %v299, %v330
      %v419 = vadd.f32 %v233, %v396
      %v420 = vadd.f32 %v300, %v333
      %v421 = vadd.f32 %v236, %v397
      %v422 = vadd.f32 %v301, %v336
      %v423 = vadd.f32 %v239, %v398
      %v424 = vadd.f32 %v302, %v339
      %v425 = vadd.f32 %v242, %v399
      %v426 = vadd.f32 %v303, %v342
      %v427 = vadd.f32 %v245, %v400
      %v428 = vadd.f32 %v304, %v345
      %v429 = vadd.f32 %v248, %v401
      %v430 = vadd.f32 %v305, %v348
      %v431 = vadd.f32 %v251, %v402
      %v432 = vadd.f32 %v306, %v351
      %v433 = vadd.f32 %v254, %v403
      %v434 = vadd.f32 %v307, %v354
      %v435 = vadd.f32 %v257, %v404
      %v436 = vadd.f32 %v308, %v357
      %v437 = vadd.f32 %v260, %v405
      %v438 = vadd.f32 %v148, %v148
      %v439 = vadd.f32 %v149, %v149
      %v440 = vadd.f32 %v150, %v150
      %v441 = vadd.f32 %v151, %v151
      %v442 = vadd.f32 %v152, %v152
      %v443 = vadd.f32 %v153, %v153
      %v444 = vadd.f32 %v154, %v154
      %v445 = vadd.f32 %v155, %v155
      %v446 = vadd.f32 %v156, %v156
      %v447 = vadd.f32 %v157, %v157
      %v448 = vadd.f32 %v158, %v158
      %v449 = vadd.f32 %v159, %v159
      %v450 = vadd.f32 %v160, %v160
      %v451 = vadd.f32 %v161, %v161
      %v452 = vadd.f32 %v162, %v162
      %v453 = vadd.f32 %v163, %v163
      %v454 = vadd.f32 %v164, %v164
      %v455 = vadd.f32 %v165, %v165
      %v456 = vadd.f32 %v166, %v166
      %v457 = vadd.f32 %v167, %v167
      %v458 = vadd.f32 %v168, %v168
      %v459 = vadd.f32 %v169, %v169
      %v460 = vadd.f32 %v170, %v170
      %v461 = vadd.f32 %v171, %v171
      %v462 = vadd.f32 %v172, %v172
      %v463 = vadd.f32 %v173, %v173
      %v464 = vadd.f32 %v174, %v174
      %v465 = vadd.f32 %v175, %v175
      %v466 = vadd.f32 %v176, %v176
      %v467 = vadd.f32 %v177, %v177
      %v468 = vadd.f32 %v178, %v178
      %v469 = vadd.f32 %v179, %v179
      %v470 = vadd.f32 %v406, %v438
      %v471 = vadd.f32 %v407, %v439
      %v472 = vadd.f32 %v408, %v440
      %v473 = vadd.f32 %v409, %v441
      %v474 = vadd.f32 %v410, %v442
      %v475 = vadd.f32 %v411, %v443
      %v476 = vadd.f32 %v412, %v444
      %v477 = vadd.f32 %v413, %v445
      %v478 = vadd.f32 %v414, %v446
      %v479 = vadd.f32 %v415, %v447
      %v480 = vadd.f32 %v416, %v448
      %v481 = vadd.f32 %v417, %v449
      %v482 = vadd.f32 %v418, %v450
      %v483 = vadd.f32 %v419, %v451
      %v484 = vadd.f32 %v420, %v452
      %v485 = vadd.f32 %v421, %v453
      %v486 = vadd.f32 %v422, %v454
      %v487 = vadd.f32 %v423, %v455
      %v488 = vadd.f32 %v424, %v456
      %v489 = vadd.f32 %v425, %v457
      %v490 = vadd.f32 %v426, %v458
      %v491 = vadd.f32 %v427, %v459
      %v492 = vadd.f32 %v428, %v460
      %v493 = vadd.f32 %v429, %v461
      %v494 = vadd.f32 %v430, %v462
      %v495 = vadd.f32 %v431, %v463
      %v496 = vadd.f32 %v432, %v464
      %v497 = vadd.f32 %v433, %v465
      %v498 = vadd.f32 %v434, %v466
      %v499 = vadd.f32 %v435, %v467
      %v500 = vadd.f32 %v436, %v468
      %v501 = vadd.f32 %v437, %v469
      %v502 = vadd.f32 %v472, 0.0
      %v503 = vadd.f32 %v473, 0.0
      %v504 = vadd.f32 %v470, %v474
      %v505 = vadd.f32 %v471, %v475
      %v506 = vadd.f32 %v472, %v476
      %v507 = vadd.f32 %v473, %v477
      %v508 = vadd.f32 %v474, %v478
      %v509 = vadd.f32 %v475, %v479
      %v510 = vadd.f32 %v476, %v480
      %v511 = vadd.f32 %v477, %v481
      %v512 = vadd.f32 %v478, %v482
      %v513 = vadd.f32 %v479, %v483
      %v514 = vadd.f32 %v480, %v484
      %v515 = vadd.f32 %v481, %v485
      %v516 = vadd.f32 %v482, %v486
      %v517 = vadd.f32 %v483, %v487
      %v518 = vadd.f32 %v484, %v488
      %v519 = vadd.f32 %v485, %v489
      %v520 = vadd.f32 %v486, %v490
      %v521 = vadd.f32 %v487, %v491
      %v522 = vadd.f32 %v488, %v492
      %v523 = vadd.f32 %v489, %v493
      %v524 = vadd.f32 %v490, %v494
      %v525 = vadd.f32 %v491, %v495
      %v526 = vadd.f32 %v492, %v496
      %v527 = vadd.f32 %v493, %v497
      %v528 = vadd.f32 %v494, %v498
      %v529 = vadd.f32 %v495, %v499
      %v530 = vadd.f32 %v496, %v500
      %v531 = vadd.f32 %v497, %v501
      %v532 = vadd.f32 %v498, 0.0
      %v533 = vadd.f32 %v499, 0.0
      %v534 = vadd.f32 %v470, %v470
      %v535 = vadd.f32 %v471, %v471
      %v536 = vadd.f32 %v472, %v472
      %v537 = vadd.f32 %v473, %v473
      %v538 = vadd.f32 %v474, %v474
      %v539 = vadd.f32 %v475, %v475
      %v540 = vadd.f32 %v476, %v476
      %v541 = vadd.f32 %v477, %v477
      %v542 = vadd.f32 %v478, %v478
      %v543 = vadd.f32 %v479, %v479
      %v544 = vadd.f32 %v480, %v480
      %v545 = vadd.f32 %v481, %v481
      %v546 = vadd.f32 %v482, %v482
      %v547 = vadd.f32 %v483, %v483
      %v548 = vadd.f32 %v484, %v484
      %v549 = vadd.f32 %v485, %v485
      %v550 = vadd.f32 %v486, %v486
      %v551 = vadd.f32 %v487, %v487
      %v552 = vadd.f32 %v488, %v488
      %v553 = vadd.f32 %v489, %v489
      %v554 = vadd.f32 %v490, %v490
      %v555 = vadd.f32 %v491, %v491
      %v556 = vadd.f32 %v492, %v492
      %v557 = vadd.f32 %v493, %v493
      %v558 = vadd.f32 %v494, %v494
      %v559 = vadd.f32 %v495, %v495
      %v560 = vadd.f32 %v496, %v496
      %v561 = vadd.f32 %v497, %v497
      %v562 = vadd.f32 %v498, %v498
      %v563 = vadd.f32 %v499, %v499
      %v564 = vadd.f32 %v500, %v500
      %v565 = vadd.f32 %v501, %v501
      %v566 = vadd.f32 %v502, %v534
      %v567 = vadd.f32 %v503, %v535
      %v568 = vadd.f32 %v504, %v536
      %v569 = vadd.f32 %v505, %v537
      %v570 = vadd.f32 %v506, %v538
      %v571 = vadd.f32 %v507, %v539
      %v572 = vadd.f32 %v508, %v540
      %v573 = vadd.f32 %v509, %v541
      %v574 = vadd.f32 %v510, %v542
      %v575 = vadd.f32 %v511, %v543
      %v576 = vadd.f32 %v512, %v544
      %v577 = vadd.f32 %v513, %v545
      %v578 = vadd.f32 %v514, %v546
      %v579 = vadd.f32 %v515, %v547
      %v580 = vadd.f32 %v516, %v548
      %v581 = vadd.f32 %v517, %v549
      %v582 = vadd.f32 %v518, %v550
      %v583 = vadd.f32 %v519, %v551
      %v584 = vadd.f32 %v520, %v552
      %v585 = vadd.f32 %v521, %v553
      %v586 = vadd.f32 %v522, %v554
      %v587 = vadd.f32 %v523, %v555
      %v588 = vadd.f32 %v524, %v556
      %v589 = vadd.f32 %v525, %v557
      %v590 = vadd.f32 %v526, %v558
      %v591 = vadd.f32 %v527, %v559
      %v592 = vadd.f32 %v528, %v560
      %v593 = vadd.f32 %v529, %v561
      %v594 = vadd.f32 %v530, %v562
      %v595 = vadd.f32 %v531, %v563
      %v596 = vadd.f32 %v532, %v564
      %v597 = vadd.f32 %v533, %v565
      %v598 = vmul.f32 %v566, 0.0625
      %v599 = vmul.f32 %v567, 0.0625
      %v600 = vmul.f32 %v568, 0.0625
      %v601 = vmul.f32 %v569, 0.0625
      %v602 = vmul.f32 %v570, 0.0625
      %v603 = vmul.f32 %v571, 0.0625
      %v604 = vmul.f32 %v572, 0.0625
      %v605 = vmul.f32 %v573, 0.0625
      %v606 = vmul.f32 %v574, 0.0625
      %v607 = vmul.f32 %v575, 0.0625
      %v608 = vmul.f32 %v576, 0.0625
      %v609 = vmul.f32 %v577, 0.0625
      %v610 = vmul.f32 %v578, 0.0625
      %v611 = vmul.f32 %v579, 0.0625
      %v612 = vmul.f32 %v580, 0.0625
      %v613 = vmul.f32 %v581, 0.0625
      %v614 = vmul.f32 %v582, 0.0625
      %v615 = vmul.f32 %v583, 0.0625
      %v616 = vmul.f32 %v584, 0.0625
      %v617 = vmul.f32 %v585, 0.0625
      %v618 = vmul.f32 %v586, 0.0625
      %v619 = vmul.f32 %v587, 0.0625
      %v620 = vmul.f32 %v588, 0.0625
      %v621 = vmul.f32 %v589, 0.0625
      %v622 = vmul.f32 %v590, 0.0625
      %v623 = vmul.f32 %v591, 0.0625
      %v624 = vmul.f32 %v592, 0.0625
      %v625 = vmul.f32 %v593, 0.0625
      %v626 = vmul.f32 %v594, 0.0625
      %v627 = vmul.f32 %v595, 0.0625
      %v628 = vmul.f32 %v596, 0.0625
      %v629 = vmul.f32 %v597, 0.0625
      %vm630 = vcmask 31744
      %631 = vst.msk [vmem:[%s147] sm:$0xff] %vm630, %v598
      %632 = vst.msk [vmem:[%s147 + $0x8] sm:$0xff] %vm630, %v599
      %633 = vst.msk [vmem:[%s147 + $0x10] sm:$0xff] %vm630, %v600
      %634 = vst.msk [vmem:[%s147 + $0x18] sm:$0xff] %vm630, %v601
      %635 = vst.msk [vmem:[%s147 + $0x20] sm:$0xff] %vm630, %v602
      %636 = vst.msk [vmem:[%s147 + $0x28] sm:$0xff] %vm630, %v603
      %637 = vst.msk [vmem:[%s147 + $0x30] sm:$0xff] %vm630, %v604
      %638 = vst.msk [vmem:[%s147 + $0x38] sm:$0xff] %vm630, %v605
      %639 = vst.msk [vmem:[%s147 + $0x40] sm:$0xff] %vm630, %v606
      %640 = vst.msk [vmem:[%s147 + $0x48] sm:$0xff] %vm630, %v607
      %641 = vst.msk [vmem:[%s147 + $0x50] sm:$0xff] %vm630, %v608
      %642 = vst.msk [vmem:[%s147 + $0x58] sm:$0xff] %vm630, %v609
      %643 = vst.msk [vmem:[%s147 + $0x60] sm:$0xff] %vm630, %v610
      %644 = vst.msk [vmem:[%s147 + $0x68] sm:$0xff] %vm630, %v611
      %645 = vst.msk [vmem:[%s147 + $0x70] sm:$0xff] %vm630, %v612
      %646 = vst.msk [vmem:[%s147 + $0x78] sm:$0xff] %vm630, %v613
      %647 = vst.msk [vmem:[%s147 + $0x80] sm:$0xff] %vm630, %v614
      %648 = vst.msk [vmem:[%s147 + $0x88] sm:$0xff] %vm630, %v615
      %649 = vst.msk [vmem:[%s147 + $0x90] sm:$0xff] %vm630, %v616
      %650 = vst.msk [vmem:[%s147 + $0x98] sm:$0xff] %vm630, %v617
      %651 = vst.msk [vmem:[%s147 + $0xa0] sm:$0xff] %vm630, %v618
      %652 = vst.msk [vmem:[%s147 + $0xa8] sm:$0xff] %vm630, %v619
      %653 = vst.msk [vmem:[%s147 + $0xb0] sm:$0xff] %vm630, %v620
      %654 = vst.msk [vmem:[%s147 + $0xb8] sm:$0xff] %vm630, %v621
      %655 = vst.msk [vmem:[%s147 + $0xc0] sm:$0xff] %vm630, %v622
      %656 = vst.msk [vmem:[%s147 + $0xc8] sm:$0xff] %vm630, %v623
      %657 = vst.msk [vmem:[%s147 + $0xd0] sm:$0xff] %vm630, %v624
      %658 = vst.msk [vmem:[%s147 + $0xd8] sm:$0xff] %vm630, %v625
      %659 = vst.msk [vmem:[%s147 + $0xe0] sm:$0xff] %vm630, %v626
      %660 = vst.msk [vmem:[%s147 + $0xe8] sm:$0xff] %vm630, %v627
      %661 = vst.msk [vmem:[%s147 + $0xf0] sm:$0xff] %vm630, %v628
      %662 = vst.msk [vmem:[%s147 + $0xf8] sm:$0xff] %vm630, %v629
      %p663 = scmp.lt.s32.totalorder %s16, 1
      %s664 = scalar_select %p663, %s16, 1
      %p665 = scmp.lt.s32.totalorder %s17, 0
      %s666 = scalar_select %p665, %s17, 0
      %s667 = smul.addr %s664, 32
      %s668 = sadd.s32 %s666, %s667
      %s669 = smul.addr %s668, 8
      %s670 = scalar_lea.vmem %s1, %s669
      // Predicated region
      $region25: #{blur.1} parent=23 // pred_check
        %p671 = pneg %p72
      $region26: #{blur.1} parent=23 // pred_check_branch
        %673 = sbr.rel (%p671) target = $region28
      $region27: #{blur.1} parent=23 // pred_region
        _
      $region28: #{blur.1} parent=23 // pred_fallthru
        _
    $region24: #{blur.1} parent=5 // pred_fallthru
      _
    %p674 = scmp.le.s32.totalorder 2, %s7
    // Predicated region
    $region29: #{blur.1} parent=5 // pred_check
      %p675 = pneg %p674
    $region30: #{blur.1} parent=5 // pred_check_branch
      %677 = sbr.rel (%p675) target = $region32
    $region31: #{blur.1} parent=5 // pred_region
      %s678 = ssub.s32 %s7, 2
      // Predicated region
      $region33: #{blur.1} parent=31 // pred_check
        %p679 = pneg %p78
      $region34: #{blur.1} parent=31 // pred_check_branch
        %681 = sbr.rel (%p679) target = $region36
      $region35: #{blur.1} parent=31 // pred_region
        %p682 = scmp.lt.s32.totalorder %s18, 1
        %s683 = scalar_select %p682, %s18, 1
        %p684 = scmp.lt.s32.totalorder %s19, 0
        %s685 = scalar_select %p684, %s19, 0
        %s686 = smul.addr %s683, 32
        %s687 = sadd.s32 %s685, %s686
        %s688 = smul.addr %s687, 8
        %s689 = scalar_lea.vmem %s1, %s688
      $region36: #{blur.1} parent=31 // pred_fallthru
        _
    $region32: #{blur.1} parent=5 // pred_fallthru
      _
  $region6: #{blur.1} parent=0 // loop_footer
    %s11 = sadd.s32 1, %s7
  $region7: #{blur.1} parent=0 // loop_footer_branch
    %6 = sbr.rel target = $region3
  $region8: #{blur.1} parent=0 // loop_exit
    _

</llo_original>
